<compile_context>
chip_gen: v6e
topology: v6e:2x2x1
jax: 0.10.0
libtpu: 0.0.40
codegen_flags: <defaults>
</compile_context>

<pallas_src>
import jax
import jax.numpy as jnp
from jax.experimental import pallas as pl
from jax.experimental.pallas import tpu as pltpu


# ---------------------------------------------------------------------------
# Generation-aware sizing (purely memory-bound op)
# ---------------------------------------------------------------------------
def _device_kind() -> str:
    try:
        return jax.devices()[0].device_kind.lower()
    except Exception:
        return ""


_KIND = _device_kind()
if "v7" in _KIND:
    _TARGET_TILE_BYTES = 4 << 20          # amortize per-step overhead vs 3.2 TB/s HBM
    _VMEM_LIMIT_BYTES = 48 << 20          # within the 64 MiB physical VMEM per TC
    _NUM_TENSORCORES = 2
elif "v6" in _KIND:
    _TARGET_TILE_BYTES = 4 << 20
    _VMEM_LIMIT_BYTES = 48 << 20          # 128 MiB physical; explicit headroom
    _NUM_TENSORCORES = 1
else:                                     # v5e / unknown: 2 MiB*5 buffers < 16 MiB default
    _TARGET_TILE_BYTES = 2 << 20
    _VMEM_LIMIT_BYTES = None
    _NUM_TENSORCORES = 2 if ("v4" in _KIND or "v5p" in _KIND) else 1


# ---------------------------------------------------------------------------
# Pallas kernel: elementwise broadcast add   out = x + pe
# ---------------------------------------------------------------------------
def _add_pe_kernel(x_ref, pe_ref, o_ref):
    # (1, tr, tl) VMEM tiles; pure VPU elementwise add.
    o_ref[...] = (x_ref[...] + pe_ref[...]).astype(o_ref.dtype)


# ---------------------------------------------------------------------------
# Tiling helpers
# ---------------------------------------------------------------------------
def _lane_dense_plane(rows: int, lanes: int):
    """Reflow an (rows, lanes) per-batch plane so the lane dim is a multiple
    of 128.  Legal because the op is a pure elementwise add with batch-only
    broadcast and both operands receive the identical row-major reshape."""
    if lanes % 128 == 0:
        return rows, lanes
    n = rows * lanes
    for k in range(16, 0, -1):            # prefer wide rows, up to 2048 lanes
        cand = 128 * k
        if n % cand == 0:
            return n // cand, cand
    return rows, lanes                    # no 128-multiple factorization; keep native


def _pick_block(dim: int, align: int, cap: int) -> int:
    """Largest multiple of `align` that divides `dim` and is <= cap; if none
    applies, `dim` itself (a block equal to the full array dim is always legal)."""
    if dim <= cap or dim % align != 0:
        return dim
    t = (cap // align) * align
    while t >= align:
        if dim % t == 0:
            return t
        t -= align
    return dim


def _choose_tiles(R: int, L: int, itemsize: int, target_bytes: int, sub_align: int):
    # Lane tile: prefer the full row (contiguous DMA rows, unmasked full-width
    # stores, fewer grid steps) whenever a (sub_align, L) slab fits the budget.
    if L % 128 != 0 or L * itemsize * sub_align <= target_bytes:
        tl = L
    else:
        tl = _pick_block(L, 128, max(128, target_bytes // (sub_align * itemsize)))
    tr_cap = max(sub_align, target_bytes // (tl * itemsize))
    tr = _pick_block(R, sub_align, tr_cap)
    return tr, tl


def _megacore_guard(R: int, L: int, tr: int, tl: int, sub_align: int, num_cores: int):
    """Multi-TC chips (v7x) only shard 'parallel' axes: make sure the (i, j)
    sub-grid has >= num_cores steps.  Prefer shrinking a tile over making the
    batch axis parallel (which would re-fetch the pe block every step)."""
    def par(tr_, tl_):
        return (R // tr_) * (L // tl_)
    while par(tr, tl) < num_cores:
        if tr % 2 == 0 and (tr // 2) % sub_align == 0 and R % (tr // 2) == 0:
            tr //= 2
        elif tl % 2 == 0 and (tl // 2) % 128 == 0 and L % (tl // 2) == 0:
            tl //= 2
        else:
            break
    return tr, tl


# ---------------------------------------------------------------------------
# Host wrapper
# ---------------------------------------------------------------------------
@jax.jit
def pallas_add_pe(x, pe):
    """x: (B, R, L);  pe: (1, R, L) broadcast over the batch.  Returns x + pe."""
    B, R, L = x.shape
    assert pe.shape == (1, R, L), (pe.shape, x.shape)
    out_dtype = jnp.result_type(x.dtype, pe.dtype)
    itemsize = jnp.dtype(out_dtype).itemsize

    # Lane-dense reflow when L (e.g. d_model=320) is not a multiple of 128.
    Rp, Lp = _lane_dense_plane(R, L)
    xs = x.reshape(B, Rp, Lp)
    pes = pe.reshape(1, Rp, Lp)

    sub_align = max(8, 32 // itemsize)            # 8 f32 / 16 bf16 / 32 int8+fp8
    tr, tl = _choose_tiles(Rp, Lp, itemsize, _TARGET_TILE_BYTES, sub_align)
    if _NUM_TENSORCORES > 1:
        tr, tl = _megacore_guard(Rp, Lp, tr, tl, sub_align, _NUM_TENSORCORES)

    # Batch innermost ("arbitrary") -> the pe block stays resident in VMEM
    # across the batch; (i, j) axes are "parallel" for multi-TC sharding.
    grid = (Rp // tr, Lp // tl, B)

    cost = pl.CostEstimate(
        flops=B * Rp * Lp,
        transcendentals=0,
        bytes_accessed=(2 * B + 1) * Rp * Lp * itemsize,   # x read + out write + pe read
    )

    out = pl.pallas_call(
        _add_pe_kernel,
        out_shape=jax.ShapeDtypeStruct((B, Rp, Lp), out_dtype),
        grid_spec=pltpu.PrefetchScalarGridSpec(
            num_scalar_prefetch=0,
            grid=grid,
            in_specs=[
                pl.BlockSpec((1, tr, tl), lambda i, j, b: (b, i, j)),      # x tile
                pl.BlockSpec((1, tr, tl), lambda i, j, b: (0, i, j),       # pe tile
                             pipeline_mode=pl.Buffered(1)),                # single-buffered
            ],
            out_specs=pl.BlockSpec((1, tr, tl), lambda i, j, b: (b, i, j)),
        ),
        compiler_params=pltpu.CompilerParams(
            dimension_semantics=("parallel", "parallel", "arbitrary"),
            vmem_limit_bytes=_VMEM_LIMIT_BYTES,
        ),
        cost_estimate=cost,
    )(xs, pes)
    return out.reshape(B, R, L)


# ---------------------------------------------------------------------------
# JAX port of SinglePositionalEmbedding
# ---------------------------------------------------------------------------
class SinglePositionalEmbedding:
    """JAX/Pallas re-implementation of the PyTorch module's forward pass."""

    def __init__(self, key: jax.Array, max_len: int = 64 * 64, d_model: int = 320):
        self.max_len = max_len
        self.d_model = d_model
        pe = jax.random.normal(key, (1, max_len, d_model), jnp.float32)  # torch.randn equiv.
        self.positional_encodings = pe                    # (1, max_len, d_model) — 3-D path
        # NCHW-order layout precomputed ONCE so the 4-D path never transposes
        # the activation: pe_ncs[0, c, s] = pe[0, s, c].
        self.pe_ncs = jnp.transpose(pe, (0, 2, 1))        # (1, d_model, max_len)
        self._pe_cache = {}                               # dtype -> (tokens, ncs) casts

    def _pe_for(self, dtype):
        """pe in the activation dtype (cast once, cached) so the kernel never
        promotes bf16/fp8 activations to an fp32 write-back stream."""
        dtype = jnp.dtype(dtype)
        if dtype == self.positional_encodings.dtype:
            return self.positional_encodings, self.pe_ncs
        if dtype not in self._pe_cache:
            self._pe_cache[dtype] = (self.positional_encodings.astype(dtype),
                                     self.pe_ncs.astype(dtype))
        return self._pe_cache[dtype]

    def __call__(self, x: jax.Array) -> jax.Array:
        if x.ndim == 4:
            B, C, H, W = x.shape
            S = H * W
            assert S == self.max_len and C == self.d_model, (
                f"expected H*W == {self.max_len} and C == {self.d_model}, got {x.shape}")
            _, pe_ncs = self._pe_for(x.dtype)
            # Add in the native (B, C, S) layout (layout change folded into the
            # parameter); reshape back to the ORIGINAL shape (correct for
            # non-square inputs, unlike the int(sqrt(S)) round-trip).
            out = pallas_add_pe(x.reshape(B, C, S), pe_ncs)
            return out.reshape(B, C, H, W)
        elif x.ndim == 3:
            B, S, C = x.shape
            # Same constraint the PyTorch broadcast (x + pe.expand(B,-1,-1)) imposes.
            assert S == self.max_len and C == self.d_model, (
                f"expected (B, {self.max_len}, {self.d_model}), got {x.shape}")
            pe_tok, _ = self._pe_for(x.dtype)
            return pallas_add_pe(x, pe_tok)
        raise ValueError("expected 3D (B, S, C) or 4D (B, C, H, W) input")


# ---------------------------------------------------------------------------
# Demo / correctness check
# ---------------------------------------------------------------------------
if __name__ == "__main__":
    key = jax.random.PRNGKey(0)
    k_pe, k_x4, k_x3 = jax.random.split(key, 3)

    # Small shapes consistent with the module (H*W == max_len, C == d_model).
    B, C, H, W = 2, 64, 16, 16
    max_len, d_model = H * W, C

    model = SinglePositionalEmbedding(k_pe, max_len=max_len, d_model=d_model)
    pe = model.positional_encodings

    # ---- 4-D (NCHW) path -------------------------------------------------
    x4 = jax.random.normal(k_x4, (B, C, H, W), jnp.float32)
    out4 = jax.block_until_ready(model(x4))
    assert out4.shape == (B, C, H, W), out4.shape
    ref_tokens = jnp.transpose(x4, (0, 2, 3, 1)).reshape(B, H * W, C) + pe
    ref4 = jnp.transpose(ref_tokens.reshape(B, H, W, C), (0, 3, 1, 2))
    assert jnp.allclose(out4, ref4, atol=1e-6, rtol=1e-6)

    # ---- 3-D (tokens) path: d_model=64 is not a 128-multiple, exercising the
    # lane-dense reflow ------------------------------------------------------
    x3 = jax.random.normal(k_x3, (B, max_len, d_model), jnp.float32)
    out3 = jax.block_until_ready(model(x3))
    assert out3.shape == (B, max_len, d_model), out3.shape
    assert jnp.allclose(out3, x3 + pe, atol=1e-6, rtol=1e-6)

    # ---- bf16 activations: pe is cast/cached, out stays bf16 ---------------
    x3b = x3.astype(jnp.bfloat16)
    out3b = jax.block_until_ready(model(x3b))
    assert out3b.dtype == jnp.bfloat16, out3b.dtype
    refb = x3b + pe.astype(jnp.bfloat16)
    assert jnp.allclose(out3b.astype(jnp.float32), refb.astype(jnp.float32),
                        atol=1e-2, rtol=1e-2)

    print("KERNEL_OK")
</pallas_src>

<mosaic_0001>
module attributes {stable_mosaic.version = 11 : i64} {
  func.func @_add_pe_kernel(%arg0: i32, %arg1: i32, %arg2: i32, %arg3: memref<1x64x256xf32, #tpu.memory_space<vmem>>, %arg4: memref<1x64x256xf32, #tpu.memory_space<vmem>>, %arg5: memref<1x64x256xf32, #tpu.memory_space<vmem>>) attributes {dimension_semantics = [#tpu.dimension_semantics<parallel>, #tpu.dimension_semantics<parallel>, #tpu.dimension_semantics<arbitrary>], iteration_bounds = array<i64: 1, 1, 2>, scalar_prefetch = 0 : i64, scratch_operands = 0 : i64, tpu.core_type = #tpu.core_type<tc>, window_params = [{transform_indices = @transform_0, window_bounds = array<i64: 1, 64, 256>}, {pipeline_mode = #tpu.pipeline_mode<synchronous>, transform_indices = @transform_1, window_bounds = array<i64: 1, 64, 256>}, {transform_indices = @transform_2, window_bounds = array<i64: 1, 64, 256>}]} {
    %c0 = arith.constant 0 : index
    %c0_0 = arith.constant 0 : index
    %c0_1 = arith.constant 0 : index
    %0 = vector.load %arg3[%c0, %c0_0, %c0_1] : memref<1x64x256xf32, #tpu.memory_space<vmem>>, vector<1x64x256xf32>
    %c0_2 = arith.constant 0 : index
    %c0_3 = arith.constant 0 : index
    %c0_4 = arith.constant 0 : index
    %1 = vector.load %arg4[%c0_2, %c0_3, %c0_4] : memref<1x64x256xf32, #tpu.memory_space<vmem>>, vector<1x64x256xf32>
    %2 = arith.addf %0, %1 : vector<1x64x256xf32>
    %c0_5 = arith.constant 0 : index
    %c0_6 = arith.constant 0 : index
    %c0_7 = arith.constant 0 : index
    %3 = vector.load %arg5[%c0_5, %c0_6, %c0_7] : memref<1x64x256xf32, #tpu.memory_space<vmem>>, vector<1x64x256xf32>
    tpu.vector_store %arg5[%c0_5, %c0_6, %c0_7], %2 {strides = array<i32>} : memref<1x64x256xf32, #tpu.memory_space<vmem>>, vector<1x64x256xf32>,
    return
  }
  func.func @transform_0(%arg0: i32, %arg1: i32, %arg2: i32) -> (i32, i32, i32) {
    %c0_i32 = arith.constant 0 : i32
    return %arg2, %arg0, %arg1 : i32, i32, i32
  }
  func.func @transform_1(%arg0: i32, %arg1: i32, %arg2: i32) -> (i32, i32, i32) {
    %c0_i32 = arith.constant 0 : i32
    %c0_i32_0 = arith.constant 0 : i32
    return %c0_i32, %arg0, %arg1 : i32, i32, i32
  }
  func.func @transform_2(%arg0: i32, %arg1: i32, %arg2: i32) -> (i32, i32, i32) {
    %c0_i32 = arith.constant 0 : i32
    return %arg2, %arg0, %arg1 : i32, i32, i32
  }
}

</mosaic_0001>

<llo_original>
// kernel: pallas_add_pe.1
$region0: #{pallas_add_pe.1}
  #allocation0 [shape = 'u32[]', space=smem, size = 0x4, offset = 0x4, fixed_abs, tag = 'smem constant byte address 0x4 - core index']
  #allocation1 [shape = 'u32[144,128]{1,0:T(1,128)}', space=vmem, size = 0x12000, scoped, tag = 'internal scratch']
  %s0 = inlined_call_operand.hbm [shape: f32[2,64,256], index: 0, kind: input, shape index: {}]
  %s1 = inlined_call_operand.hbm [shape: f32[1,64,256], index: 1, kind: input, shape index: {}]
  %s2 = inlined_call_operand.hbm [shape: f32[2,64,256], index: 2, kind: output, shape index: {}]
  %s3 = sld [smem:[#allocation0]]
  $region49: #{pallas_add_pe.1} parent=0
    _
  %s5 = ssub.s32 1, %s3
  %s6 = scalar_select 0, %s5, %s3
  $region1: #{pallas_add_pe.1} parent=0
    #allocation2 [shape = 'u8[131072]{0}', space=vmem, size = 0x20000, scoped, tag = 'input window, operand 0']
    #allocation3 [shape = 's32[2]{0}', space=sflag, size = 0x8, scoped, tag = 'scoped memory for pallas_add_pe.1']
    #allocation4 [shape = 's32[2]{0}', space=sflag, size = 0x8, scoped, tag = 'scoped memory for pallas_add_pe.1']
    #allocation5 [shape = 'u8[65536]{0}', space=vmem, size = 0x10000, scoped, tag = 'input window, operand 1, single buffered']
    #allocation6 [shape = 's32[1]{0}', space=sflag, size = 0x4, scoped, tag = 'scoped memory for pallas_add_pe.1']
    #allocation7 [shape = 'u8[131072]{0}', space=vmem, size = 0x20000, scoped, tag = 'output window, operand 0']
    %7 = vsyncpa [#allocation3], 0
    %s8 = scalar_lea.sflag [#allocation3], 1
    %9 = vsyncpa %s8, 0
    %10 = vsyncpa [#allocation6], 0
    %11 = vsyncpa [#allocation4], 0
    %s12 = scalar_lea.sflag [#allocation4], 1
    %13 = vsyncpa %s12, 0
    loop: start=0, step=1, limit=4
    $region2: #{pallas_add_pe.1} parent=1 // loop_pre_header
      _
    $region3: #{pallas_add_pe.1} parent=1 // loop_header
      %s15 = sphi 0, %s19
      %p16 = scmp.ge.s32.totalorder %s15, 4
      %s22 = sphi 0, %s41
      %s23 = sphi 0, %s37
      %s24 = sphi 0, %s33
      %s25 = sphi 0, %s22
      %s26 = sphi 0, %s23
      %s27 = sphi 0, %s24
      %s28 = sphi 0, %s25
      %s29 = sphi 0, %s26
      %s30 = sphi 0, %s27
      %s48 = sphi 0, %s50
      %s51 = sphi 0, %s48
      %s52 = sphi 0, %s51
      %s68 = sphi 0, %s52
      %s76 = sphi 0, %s78
      %s79 = sphi 0, %s76
      %s80 = sphi 0, %s79
      %s96 = sphi 0, %s80
      %s106 = sphi 0, %s108
      %s109 = sphi 0, %s106
      %s110 = sphi 0, %s109
      %s126 = sphi 0, %s110
    $region4: #{pallas_add_pe.1} parent=1 // loop_header_branch
      %18 = sbr.rel (%p16) target = $region8
    $region5: #{pallas_add_pe.1} parent=1 // loop_body
      %s20 = ssub.s32 %s15, 1
      %s21 = ssub.s32 %s15, 2
      %s31 = sadd.s32 1, %s24
      %p32 = scmp.ge.s32.totalorder %s31, 2
      %s33 = scalar_select %p32, 0, %s31
      %s34 = sadd.s32 1, %s23
      %s35 = scalar_select %p32, %s34, %s23
      %p36 = scmp.ge.s32.totalorder %s35, 1
      %s37 = scalar_select %p36, 0, %s35
      %s38 = sadd.s32 1, %s22
      %s39 = scalar_select %p36, %s38, %s22
      %p40 = scmp.ge.s32.totalorder %s39, 1
      %s41 = scalar_select %p40, 0, %s39
      %s42 = ssub.s32 %s24, %s33
      %s43 = ssub.s32 %s22, %s41
      %s44 = sor.u32 %s42, %s43
      %s45 = ssub.s32 %s23, %s37
      %s46 = sor.u32 %s44, %s45
      %p47 = scmp.eq.s32.totalorder %s46, 0
      %s49 = sadd.s32 %s48, 1
      %s50 = scalar_select %p47, %s48, %s49
      %p53 = pneg %p47
      %p54 = scmp.eq.s32.totalorder %s15, 1
      %p55 = por %p53, %p54
      %p56 = scmp.ne.s32.totalorder %s48, %s51
      %p57 = scmp.eq.s32.totalorder %s15, 0
      %p58 = por %p56, %p57
      %p59 = scmp.ne.s32.totalorder %s48, %s51
      %p60 = scmp.eq.s32.totalorder %s20, 1
      %p61 = por %p59, %p60
      %p62 = scmp.ne.s32.totalorder %s51, %s52
      %p63 = scmp.eq.s32.totalorder %s20, 0
      %p64 = por %p62, %p63
      %p65 = scmp.ne.s32.totalorder %s51, %s52
      %p66 = scmp.eq.s32.totalorder %s21, 1
      %p67 = por %p65, %p66
      %p69 = scmp.ne.s32.totalorder %s52, %s68
      %p70 = scmp.eq.s32.totalorder %s21, 0
      %p71 = por %p69, %p70
      %s72 = ssub.s32 %s22, %s41
      %s73 = ssub.s32 %s23, %s37
      %s74 = sor.u32 %s72, %s73
      %p75 = scmp.eq.s32.totalorder %s74, 0
      %s77 = sadd.s32 %s76, 1
      %s78 = scalar_select %p75, %s76, %s77
      %p81 = pneg %p75
      %p82 = scmp.eq.s32.totalorder %s15, 1
      %p83 = por %p81, %p82
      %p84 = scmp.ne.s32.totalorder %s76, %s79
      %p85 = scmp.eq.s32.totalorder %s15, 0
      %p86 = por %p84, %p85
      %p87 = scmp.ne.s32.totalorder %s76, %s79
      %p88 = scmp.eq.s32.totalorder %s20, 1
      %p89 = por %p87, %p88
      %p90 = scmp.ne.s32.totalorder %s79, %s80
      %p91 = scmp.eq.s32.totalorder %s20, 0
      %p92 = por %p90, %p91
      %p93 = scmp.ne.s32.totalorder %s79, %s80
      %p94 = scmp.eq.s32.totalorder %s21, 1
      %p95 = por %p93, %p94
      %p97 = scmp.ne.s32.totalorder %s80, %s96
      %p98 = scmp.eq.s32.totalorder %s21, 0
      %p99 = por %p97, %p98
      %s100 = ssub.s32 %s24, %s33
      %s101 = ssub.s32 %s22, %s41
      %s102 = sor.u32 %s100, %s101
      %s103 = ssub.s32 %s23, %s37
      %s104 = sor.u32 %s102, %s103
      %p105 = scmp.eq.s32.totalorder %s104, 0
      %s107 = sadd.s32 %s106, 1
      %s108 = scalar_select %p105, %s106, %s107
      %p111 = pneg %p105
      %p112 = scmp.eq.s32.totalorder %s15, 1
      %p113 = por %p111, %p112
      %p114 = scmp.ne.s32.totalorder %s106, %s109
      %p115 = scmp.eq.s32.totalorder %s15, 0
      %p116 = por %p114, %p115
      %p117 = scmp.ne.s32.totalorder %s106, %s109
      %p118 = scmp.eq.s32.totalorder %s20, 1
      %p119 = por %p117, %p118
      %p120 = scmp.ne.s32.totalorder %s109, %s110
      %p121 = scmp.eq.s32.totalorder %s20, 0
      %p122 = por %p120, %p121
      %p123 = scmp.ne.s32.totalorder %s109, %s110
      %p124 = scmp.eq.s32.totalorder %s21, 1
      %p125 = por %p123, %p124
      %p127 = scmp.ne.s32.totalorder %s110, %s126
      %p128 = scmp.eq.s32.totalorder %s21, 0
      %p129 = por %p127, %p128
      %p130 = scmp.le.s32.totalorder 1, %s15
      %p131 = scmp.lt.s32.totalorder %s15, 3
      %p132 = pnand %p130, %p131
      %p133 = pneg %p132
      // Predicated region
      $region9: #{pallas_add_pe.1} parent=5 // pred_check
        _
      $region10: #{pallas_add_pe.1} parent=5 // pred_check_branch
        %135 = sbr.rel (%p132) target = $region12
      $region11: #{pallas_add_pe.1} parent=5 // pred_region
        %s136 = ssub.s32 %s15, 1
        // Predicated region
        $region13: #{pallas_add_pe.1} parent=11 // pred_check
          %p137 = pneg %p92
        $region14: #{pallas_add_pe.1} parent=11 // pred_check_branch
          %139 = sbr.rel (%p137) target = $region16
        $region15: #{pallas_add_pe.1} parent=11 // pred_region
          %s140 = smul.u32 8, %s25
          %s141 = smul.u32 2, %s26
          %s143 = ssub.s32 2048, 2048
          %144 = vsyncadd [#allocation6], %s143
          %s145 = smul.addr %s140, 2
          %s146 = sadd.s32 %s141, %s145
          %s147 = smul.addr %s146, 128
          %s148 = scalar_lea.hbm %s1, %s147
          %s149 = sshll.u32 [#allocation5], 4
          %s150 = int_to_ptr.vmem [resolvable:$true] %s149
          %155 = dma.hbm_to_vmem [thread:$0]  %s148, 2048, %s150, [#allocation6], 256, 256, 16
        $region16: #{pallas_add_pe.1} parent=11 // pred_fallthru
          _
      $region12: #{pallas_add_pe.1} parent=5 // pred_fallthru
        _
      %p156 = scmp.lt.s32.totalorder %s15, 2
      // Predicated region
      $region17: #{pallas_add_pe.1} parent=5 // pred_check
        %p157 = pneg %p156
      $region18: #{pallas_add_pe.1} parent=5 // pred_check_branch
        %159 = sbr.rel (%p157) target = $region20
      $region19: #{pallas_add_pe.1} parent=5 // pred_region
        // Predicated region
        $region21: #{pallas_add_pe.1} parent=19 // pred_check
          %p160 = pneg %p58
        $region22: #{pallas_add_pe.1} parent=19 // pred_check_branch
          %162 = sbr.rel (%p160) target = $region24
        $region23: #{pallas_add_pe.1} parent=19 // pred_region
          %s163 = sand.u32 %s48, 1
          %s164 = scalar_lea.sflag [#allocation3], %s163
          %s165 = sand.u32 %s48, 1
          %s166 = smul.addr %s165, 128
          %s167 = scalar_lea.vmem [#allocation2], %s166
          %s168 = smul.u32 8, %s22
          %s169 = smul.u32 2, %s23
          %s171 = ssub.s32 2048, 2048
          %172 = vsyncadd %s164, %s171
          %s173 = smul.addr %s168, 2
          %s174 = sadd.s32 %s169, %s173
          %s175 = smul.addr %s24, 16
          %s176 = sadd.s32 %s174, %s175
          %s177 = smul.addr %s176, 128
          %s178 = scalar_lea.hbm %s0, %s177
          %s179 = sshll.u32 %s167, 4
          %s180 = int_to_ptr.vmem [resolvable:$true] %s179
          %185 = dma.hbm_to_vmem [thread:$0]  %s178, 2048, %s180, %s164, 256, 256, 16
        $region24: #{pallas_add_pe.1} parent=19 // pred_fallthru
          _
      $region20: #{pallas_add_pe.1} parent=5 // pred_fallthru
        _
      %p186 = scmp.le.s32.totalorder 1, %s15
      %p187 = scmp.lt.s32.totalorder %s15, 3
      %p188 = pnand %p186, %p187
      %p189 = pneg %p188
      // Predicated region
      $region25: #{pallas_add_pe.1} parent=5 // pred_check
        _
      $region26: #{pallas_add_pe.1} parent=5 // pred_check_branch
        %191 = sbr.rel (%p188) target = $region28
      $region27: #{pallas_add_pe.1} parent=5 // pred_region
        %s192 = ssub.s32 %s15, 1
        %s193 = sand.u32 %s51, 1
        %s194 = scalar_lea.sflag [#allocation3], %s193
        %s195 = sand.u32 %s51, 1
        %s196 = smul.addr %s195, 128
        %s197 = scalar_lea.vmem [#allocation2], %s196
        // Predicated region
        $region29: #{pallas_add_pe.1} parent=27 // pred_check
          %p198 = pneg %p64
        $region30: #{pallas_add_pe.1} parent=27 // pred_check_branch
          %200 = sbr.rel (%p198) target = $region32
        $region31: #{pallas_add_pe.1} parent=27 // pred_region
          %201 = dma.done %s194, 2048
        $region32: #{pallas_add_pe.1} parent=27 // pred_fallthru
          _
        // Predicated region
        $region33: #{pallas_add_pe.1} parent=27 // pred_check
          %p202 = pneg %p92
        $region34: #{pallas_add_pe.1} parent=27 // pred_check_branch
          %204 = sbr.rel (%p202) target = $region36
        $region35: #{pallas_add_pe.1} parent=27 // pred_region
          %205 = dma.done [#allocation6], 2048
        $region36: #{pallas_add_pe.1} parent=27 // pred_fallthru
          _
        %s206 = sand.u32 %s51, 1
        %s207 = scalar_lea.sflag [#allocation3], %s206
        %s208 = sand.u32 %s51, 1
        %s209 = smul.addr %s208, 128
        %s210 = scalar_lea.vmem [#allocation2], %s209
        %p211 = pneg %p64
        %p212 = pneg %p61
        %p213 = pneg %p92
        %p214 = pneg %p89
        %p215 = pneg %p122
        %p216 = pneg %p119
        %s217 = sand.u32 %s109, 1
        %s218 = scalar_lea.sflag [#allocation4], %s217
        %s219 = sand.u32 %s109, 1
        %s220 = smul.addr %s219, 128
        %s221 = scalar_lea.vmem [#allocation7], %s220
        %s222 = smul.u32 8, %s25
        %s223 = smul.u32 2, %s26
        %s224 = smul.u32 8, %s25
        %s225 = smul.u32 2, %s26
        %s226 = smul.u32 8, %s25
        %s227 = smul.u32 2, %s26
        %v228 = vld [vmem:[%s197] sm:$0xff]
        %v229 = vld [vmem:[%s197 + $0x8] sm:$0xff]
        %v230 = vld [vmem:[%s197 + $0x10] sm:$0xff]
        %v231 = vld [vmem:[%s197 + $0x18] sm:$0xff]
        %v232 = vld [vmem:[%s197 + $0x20] sm:$0xff]
        %v233 = vld [vmem:[%s197 + $0x28] sm:$0xff]
        %v234 = vld [vmem:[%s197 + $0x30] sm:$0xff]
        %v235 = vld [vmem:[%s197 + $0x38] sm:$0xff]
        %v236 = vld [vmem:[%s197 + $0x40] sm:$0xff]
        %v237 = vld [vmem:[%s197 + $0x48] sm:$0xff]
        %v238 = vld [vmem:[%s197 + $0x50] sm:$0xff]
        %v239 = vld [vmem:[%s197 + $0x58] sm:$0xff]
        %v240 = vld [vmem:[%s197 + $0x60] sm:$0xff]
        %v241 = vld [vmem:[%s197 + $0x68] sm:$0xff]
        %v242 = vld [vmem:[%s197 + $0x70] sm:$0xff]
        %v243 = vld [vmem:[%s197 + $0x78] sm:$0xff]
        %v244 = vld [vmem:[#allocation5] sm:$0xff]
        %v245 = vld [vmem:[#allocation5 + $0x8] sm:$0xff]
        %v246 = vld [vmem:[#allocation5 + $0x10] sm:$0xff]
        %v247 = vld [vmem:[#allocation5 + $0x18] sm:$0xff]
        %v248 = vld [vmem:[#allocation5 + $0x20] sm:$0xff]
        %v249 = vld [vmem:[#allocation5 + $0x28] sm:$0xff]
        %v250 = vld [vmem:[#allocation5 + $0x30] sm:$0xff]
        %v251 = vld [vmem:[#allocation5 + $0x38] sm:$0xff]
        %v252 = vld [vmem:[#allocation5 + $0x40] sm:$0xff]
        %v253 = vld [vmem:[#allocation5 + $0x48] sm:$0xff]
        %v254 = vld [vmem:[#allocation5 + $0x50] sm:$0xff]
        %v255 = vld [vmem:[#allocation5 + $0x58] sm:$0xff]
        %v256 = vld [vmem:[#allocation5 + $0x60] sm:$0xff]
        %v257 = vld [vmem:[#allocation5 + $0x68] sm:$0xff]
        %v258 = vld [vmem:[#allocation5 + $0x70] sm:$0xff]
        %v259 = vld [vmem:[#allocation5 + $0x78] sm:$0xff]
        %v260 = vadd.f32 %v228, %v244
        %v261 = vadd.f32 %v229, %v245
        %v262 = vadd.f32 %v230, %v246
        %v263 = vadd.f32 %v231, %v247
        %v264 = vadd.f32 %v232, %v248
        %v265 = vadd.f32 %v233, %v249
        %v266 = vadd.f32 %v234, %v250
        %v267 = vadd.f32 %v235, %v251
        %v268 = vadd.f32 %v236, %v252
        %v269 = vadd.f32 %v237, %v253
        %v270 = vadd.f32 %v238, %v254
        %v271 = vadd.f32 %v239, %v255
        %v272 = vadd.f32 %v240, %v256
        %v273 = vadd.f32 %v241, %v257
        %v274 = vadd.f32 %v242, %v258
        %v275 = vadd.f32 %v243, %v259
        %276 = vst [vmem:[%s221] sm:$0xff] %v260
        %277 = vst [vmem:[%s221 + $0x8] sm:$0xff] %v261
        %278 = vst [vmem:[%s221 + $0x10] sm:$0xff] %v262
        %279 = vst [vmem:[%s221 + $0x18] sm:$0xff] %v263
        %280 = vst [vmem:[%s221 + $0x20] sm:$0xff] %v264
        %281 = vst [vmem:[%s221 + $0x28] sm:$0xff] %v265
        %282 = vst [vmem:[%s221 + $0x30] sm:$0xff] %v266
        %283 = vst [vmem:[%s221 + $0x38] sm:$0xff] %v267
        %284 = vst [vmem:[%s221 + $0x40] sm:$0xff] %v268
        %285 = vst [vmem:[%s221 + $0x48] sm:$0xff] %v269
        %286 = vst [vmem:[%s221 + $0x50] sm:$0xff] %v270
        %287 = vst [vmem:[%s221 + $0x58] sm:$0xff] %v271
        %288 = vst [vmem:[%s221 + $0x60] sm:$0xff] %v272
        %289 = vst [vmem:[%s221 + $0x68] sm:$0xff] %v273
        %290 = vst [vmem:[%s221 + $0x70] sm:$0xff] %v274
        %291 = vst [vmem:[%s221 + $0x78] sm:$0xff] %v275
        %s292 = sand.u32 %s109, 1
        %s293 = scalar_lea.sflag [#allocation4], %s292
        %s294 = sand.u32 %s109, 1
        %s295 = smul.addr %s294, 128
        %s296 = scalar_lea.vmem [#allocation7], %s295
        // Predicated region
        $region37: #{pallas_add_pe.1} parent=27 // pred_check
          %p297 = pneg %p119
        $region38: #{pallas_add_pe.1} parent=27 // pred_check_branch
          %299 = sbr.rel (%p297) target = $region40
        $region39: #{pallas_add_pe.1} parent=27 // pred_region
          %s300 = smul.u32 8, %s25
          %s301 = smul.u32 2, %s26
          %s303 = ssub.s32 2048, 2048
          %304 = vsyncadd %s293, %s303
          %s305 = smul.addr %s300, 2
          %s306 = sadd.s32 %s301, %s305
          %s307 = smul.addr %s27, 16
          %s308 = sadd.s32 %s306, %s307
          %s309 = smul.addr %s308, 128
          %s310 = scalar_lea.hbm %s2, %s309
          %s311 = sshll.u32 %s296, 4
          %s312 = int_to_ptr.vmem [resolvable:$true] %s311
          %317 = dma.vmem_to_hbm [thread:$0]  %s312, 2048, %s310, %s293, 256, 256, 16
        $region40: #{pallas_add_pe.1} parent=27 // pred_fallthru
          _
      $region28: #{pallas_add_pe.1} parent=5 // pred_fallthru
        _
      %p318 = scmp.le.s32.totalorder 2, %s15
      // Predicated region
      $region41: #{pallas_add_pe.1} parent=5 // pred_check
        %p319 = pneg %p318
      $region42: #{pallas_add_pe.1} parent=5 // pred_check_branch
        %321 = sbr.rel (%p319) target = $region44
      $region43: #{pallas_add_pe.1} parent=5 // pred_region
        %s322 = ssub.s32 %s15, 2
        // Predicated region
        $region45: #{pallas_add_pe.1} parent=43 // pred_check
          %p323 = pneg %p125
        $region46: #{pallas_add_pe.1} parent=43 // pred_check_branch
          %325 = sbr.rel (%p323) target = $region48
        $region47: #{pallas_add_pe.1} parent=43 // pred_region
          %s326 = sand.u32 %s110, 1
          %s327 = scalar_lea.sflag [#allocation4], %s326
          %s328 = sand.u32 %s110, 1
          %s329 = smul.addr %s328, 128
          %s330 = scalar_lea.vmem [#allocation7], %s329
          %331 = dma.done %s327, 2048
        $region48: #{pallas_add_pe.1} parent=43 // pred_fallthru
          _
      $region44: #{pallas_add_pe.1} parent=5 // pred_fallthru
        _
    $region6: #{pallas_add_pe.1} parent=1 // loop_footer
      %s19 = sadd.s32 1, %s15
    $region7: #{pallas_add_pe.1} parent=1 // loop_footer_branch
      %14 = sbr.rel target = $region3
    $region8: #{pallas_add_pe.1} parent=1 // loop_exit
      _
    %332 = vsyncpa [#allocation3], 1
    %s333 = scalar_lea.sflag [#allocation3], 1
    %334 = vsyncpa %s333, 1
    %335 = vsyncpa [#allocation6], 1
    %336 = vsyncpa [#allocation4], 1
    %s337 = scalar_lea.sflag [#allocation4], 1
    %338 = vsyncpa %s337, 1

</llo_original>
